<compile_context>
chip_gen: v7x
topology: tpu7x:2x2x1
jax: 0.10.0
libtpu: 0.0.40
codegen_flags: <defaults>
</compile_context>

<pallas_src>
import jax
import jax.numpy as jnp
from jax.experimental import pallas as pl
from jax.experimental.pallas import tpu as pltpu


def _make_kernel(H, W, C_in, C_out, use_relu):
    Wp = W + 2

    def kernel(x_ref, w_ref, ba_ref, o_ref):
        # x_ref : (1, H, W*C_in)        unpadded input, channels innermost (lane axis)
        # w_ref : (3*Wp*C_in, W*C_out)  band-structured conv weights
        # ba_ref: (2, W*C_out)          row 0 = tiled bias, row 1 = tiled PReLU slope
        # o_ref : (1, H, W*C_out)       lane-dense output block
        x = x_ref[0]                                            # (H, W*C_in)

        # ---- reflection pad (pad=1), fused into the kernel -------------------
        left = x[:, C_in:2 * C_in]                              # column w=1
        right = x[:, (W - 2) * C_in:(W - 1) * C_in]             # column w=W-2
        xw = jnp.concatenate([left, x, right], axis=1)          # (H, Wp*C_in)
        xp = jnp.concatenate([xw[1:2, :], xw, xw[H - 2:H - 1, :]],
                             axis=0)                            # (H+2, Wp*C_in)

        # ---- im2row over the 3 kernel rows -> ONE lane-dense matmul ----------
        lhs = jnp.concatenate([xp[0:H, :], xp[1:H + 1, :], xp[2:H + 2, :]],
                              axis=1)                           # (H, 3*Wp*C_in)
        y = jnp.dot(lhs, w_ref[...],
                    preferred_element_type=jnp.float32)         # (H, W*C_out)

        # ---- bias + PReLU, all (H, W*C_out) so stores stay unmasked ----------
        y = y + ba_ref[0:1, :]
        if use_relu:
            alpha = ba_ref[1:2, :]
            y = jnp.where(y > 0, y, alpha * y)

        o_ref[0] = y.astype(o_ref.dtype)

    return kernel


def _pack_band_weight(weight, W):
    """(C_out, C_in, 3, 3) -> (3*(W+2)*C_in, W*C_out) band matrix.

    band[(kh*(W+2)+wi)*C_in + ci, w*C_out + co] = weight[co, ci, kh, wi-w]
                                                  if 0 <= wi-w <= 2 else 0
    so  out[h, w*C_out+co] = sum_j lhs[h, j] * band[j, w*C_out+co]
    reproduces the 3x3 'valid' convolution on the reflection-padded image.
    """
    C_out, C_in, _, _ = weight.shape
    Wp = W + 2
    wt = jnp.transpose(weight, (2, 3, 1, 0))                    # (3, 3, C_in, C_out)
    wi = jnp.arange(Wp)[:, None]                                # (Wp, 1)
    w = jnp.arange(W)[None, :]                                  # (1, W)
    kw = wi - w                                                 # (Wp, W)
    valid = (kw >= 0) & (kw <= 2)
    kw_c = jnp.clip(kw, 0, 2)
    wg = wt[:, kw_c, :, :]                                      # (3, Wp, W, C_in, C_out)
    wg = wg * valid[None, :, :, None, None].astype(wg.dtype)
    band = jnp.transpose(wg, (0, 1, 3, 2, 4))                   # (3, Wp, C_in, W, C_out)
    return band.reshape(3 * Wp * C_in, W * C_out).astype(jnp.float32)


def custom_conv2d(x_nchw, weight, bias, prelu_alpha, use_relu=True):
    """
    x_nchw      : (B, C_in, H, W)  float32
    weight      : (C_out, C_in, 3, 3)  (PyTorch Conv2d layout)
    bias        : (C_out,)
    prelu_alpha : (C_out,)
    returns     : (B, C_out, H, W)
    """
    B, C_in, H, W = x_nchw.shape
    C_out = weight.shape[0]
    Wp = W + 2

    # NCHW -> (B, H, W*C_in): channels innermost so they sit on the lane axis.
    # The NHWC->(H, W*C) reshape is free (contiguous); only one transpose pass remains.
    x_flat = jnp.transpose(x_nchw, (0, 2, 3, 1)).reshape(B, H, W * C_in)
    x_flat = x_flat.astype(jnp.float32)

    w_band = _pack_band_weight(weight, W)                       # (3*Wp*C_in, W*C_out)
    ba = jnp.stack([jnp.tile(bias.astype(jnp.float32), W),
                    jnp.tile(prelu_alpha.astype(jnp.float32), W)])  # (2, W*C_out)

    kernel = _make_kernel(H, W, C_in, C_out, use_relu)

    out_flat = pl.pallas_call(
        kernel,
        out_shape=jax.ShapeDtypeStruct((B, H, W * C_out), jnp.float32),
        grid_spec=pltpu.PrefetchScalarGridSpec(
            num_scalar_prefetch=0,
            grid=(B,),
            in_specs=[
                pl.BlockSpec((1, H, W * C_in), lambda b: (b, 0, 0)),
                pl.BlockSpec((3 * Wp * C_in, W * C_out), lambda b: (0, 0)),
                pl.BlockSpec((2, W * C_out), lambda b: (0, 0)),
            ],
            out_specs=pl.BlockSpec((1, H, W * C_out), lambda b: (b, 0, 0)),
        ),
        compiler_params=pltpu.CompilerParams(
            dimension_semantics=("parallel",),
            # Blocks here are tiny; this is the knob to raise together with a row-tiled
            # grid when scaling H/W/C toward v7x's 64 MiB (32 MiB scoped) VMEM budget.
            vmem_limit_bytes=32 * 1024 * 1024,
        ),
    )(x_flat, w_band, ba)

    # (B, H, W*C_out) is bit-identical to NHWC; reshape is free, one transpose back to NCHW.
    out_nhwc = out_flat.reshape(B, H, W, C_out)
    return jnp.transpose(out_nhwc, (0, 3, 1, 2))


def _reference(x_nchw, weight, bias, prelu_alpha, use_relu=True):
    """Pure-JAX reference for correctness checking."""
    x_pad = jnp.pad(x_nchw, ((0, 0), (0, 0), (1, 1), (1, 1)), mode="reflect")
    y = jax.lax.conv_general_dilated(
        x_pad, weight, window_strides=(1, 1), padding="VALID",
        dimension_numbers=("NCHW", "OIHW", "NCHW"))
    y = y + bias[None, :, None, None]
    if use_relu:
        a = prelu_alpha[None, :, None, None]
        y = jnp.where(y > 0, y, a * y)
    return y


if __name__ == "__main__":
    key = jax.random.PRNGKey(0)
    k_x, k_w, k_b = jax.random.split(key, 3)

    B, C_in, H, W = 2, 4, 16, 16
    C_out = 8
    use_relu = True

    x = jax.random.normal(k_x, (B, C_in, H, W), dtype=jnp.float32)
    # Deterministic parameter init (synthetic, Conv2d/PReLU-shaped).
    weight = jax.random.normal(k_w, (C_out, C_in, 3, 3), dtype=jnp.float32) * 0.1
    bias = jax.random.normal(k_b, (C_out,), dtype=jnp.float32) * 0.1
    prelu_alpha = jnp.full((C_out,), 0.25, dtype=jnp.float32)  # nn.PReLU default

    out = custom_conv2d(x, weight, bias, prelu_alpha, use_relu=use_relu)
    out = jax.block_until_ready(out)

    ref = _reference(x, weight, bias, prelu_alpha, use_relu=use_relu)
    assert out.shape == (B, C_out, H, W)
    assert jnp.allclose(out, ref, atol=1e-3, rtol=1e-3), "mismatch vs reference"

    print("KERNEL_OK")
</pallas_src>

<mosaic_0001>
module attributes {stable_mosaic.version = 11 : i64} {
  func.func @kernel(%arg0: i32, %arg1: memref<1x16x64xf32, #tpu.memory_space<vmem>>, %arg2: memref<216x128xf32, #tpu.memory_space<vmem>>, %arg3: memref<2x128xf32, #tpu.memory_space<vmem>>, %arg4: memref<1x16x128xf32, #tpu.memory_space<vmem>>) attributes {dimension_semantics = [#tpu.dimension_semantics<parallel>], iteration_bounds = array<i64: 2>, scalar_prefetch = 0 : i64, scratch_operands = 0 : i64, tpu.core_type = #tpu.core_type<tc>, window_params = [{transform_indices = @transform_0, window_bounds = array<i64: 1, 16, 64>}, {pipeline_mode = #tpu.pipeline_mode<synchronous>, transform_indices = @transform_1, window_bounds = array<i64: 216, 128>}, {pipeline_mode = #tpu.pipeline_mode<synchronous>, transform_indices = @transform_2, window_bounds = array<i64: 2, 128>}, {transform_indices = @transform_3, window_bounds = array<i64: 1, 16, 128>}]} {
    %c0 = arith.constant 0 : index
    %c0_0 = arith.constant 0 : index
    %c0_1 = arith.constant 0 : index
    %0 = vector.load %arg1[%c0, %c0_0, %c0_1] : memref<1x16x64xf32, #tpu.memory_space<vmem>>, vector<1x16x64xf32>
    %1 = vector.shape_cast %0 : vector<1x16x64xf32> to vector<16x64xf32>
    %2 = vector.extract_strided_slice %1 {offsets = [0, 4], sizes = [16, 4], strides = [1, 1]} : vector<16x64xf32> to vector<16x4xf32>
    %3 = vector.extract_strided_slice %1 {offsets = [0, 56], sizes = [16, 4], strides = [1, 1]} : vector<16x64xf32> to vector<16x4xf32>
    %4 = tpu.concatenate %2, %1, %3 in 1 : vector<16x4xf32>, vector<16x64xf32>, vector<16x4xf32> -> vector<16x72xf32>
    %5 = vector.extract_strided_slice %4 {offsets = [1, 0], sizes = [1, 72], strides = [1, 1]} : vector<16x72xf32> to vector<1x72xf32>
    %6 = vector.extract_strided_slice %4 {offsets = [14, 0], sizes = [1, 72], strides = [1, 1]} : vector<16x72xf32> to vector<1x72xf32>
    %7 = tpu.concatenate %5, %4, %6 in 0 : vector<1x72xf32>, vector<16x72xf32>, vector<1x72xf32> -> vector<18x72xf32>
    %8 = vector.extract_strided_slice %7 {offsets = [0, 0], sizes = [16, 72], strides = [1, 1]} : vector<18x72xf32> to vector<16x72xf32>
    %9 = vector.extract_strided_slice %7 {offsets = [1, 0], sizes = [16, 72], strides = [1, 1]} : vector<18x72xf32> to vector<16x72xf32>
    %10 = vector.extract_strided_slice %7 {offsets = [2, 0], sizes = [16, 72], strides = [1, 1]} : vector<18x72xf32> to vector<16x72xf32>
    %11 = tpu.concatenate %8, %9, %10 in 1 : vector<16x72xf32>, vector<16x72xf32>, vector<16x72xf32> -> vector<16x216xf32>
    %c0_2 = arith.constant 0 : index
    %c0_3 = arith.constant 0 : index
    %12 = vector.load %arg2[%c0_2, %c0_3] : memref<216x128xf32, #tpu.memory_space<vmem>>, vector<216x128xf32>
    %cst = arith.constant dense<0.000000e+00> : vector<16x128xf32>
    %13 = tpu.matmul %11, %12, %cst {dimension_numbers = #tpu.dot_dimension_numbers<[1], [0], [0], [1], [0, 0, 1, 1], [], []>} : vector<16x216xf32>, vector<216x128xf32>, vector<16x128xf32> -> vector<16x128xf32>
    %c0_4 = arith.constant 0 : index
    %c0_5 = arith.constant 0 : index
    %14 = vector.load %arg3[%c0_4, %c0_5] : memref<2x128xf32, #tpu.memory_space<vmem>>, vector<1x128xf32>
    %15 = vector.broadcast %14 : vector<1x128xf32> to vector<16x128xf32>
    %16 = arith.addf %13, %15 : vector<16x128xf32>
    %c1 = arith.constant 1 : index
    %c0_6 = arith.constant 0 : index
    %17 = vector.load %arg3[%c1, %c0_6] : memref<2x128xf32, #tpu.memory_space<vmem>>, vector<1x128xf32>
    %cst_7 = arith.constant 0.000000e+00 : f32
    %18 = vector.broadcast %cst_7 : f32 to vector<16x128xf32>
    %19 = arith.cmpf ogt, %16, %18 : vector<16x128xf32>
    %20 = vector.broadcast %17 : vector<1x128xf32> to vector<16x128xf32>
    %21 = arith.mulf %20, %16 : vector<16x128xf32>
    %22 = arith.select %19, %16, %21 : vector<16x128xi1>, vector<16x128xf32>
    %c0_8 = arith.constant 0 : index
    %c0_9 = arith.constant 0 : index
    %c0_10 = arith.constant 0 : index
    %23 = vector.load %arg4[%c0_8, %c0_9, %c0_10] : memref<1x16x128xf32, #tpu.memory_space<vmem>>, vector<1x16x128xf32>
    %24 = vector.shape_cast %23 : vector<1x16x128xf32> to vector<16x128xf32>
    %25 = vector.shape_cast %22 : vector<16x128xf32> to vector<1x16x128xf32>
    tpu.vector_store %arg4[%c0_8, %c0_9, %c0_10], %25 {strides = array<i32>} : memref<1x16x128xf32, #tpu.memory_space<vmem>>, vector<1x16x128xf32>,
    return
  }
  func.func @transform_0(%arg0: i32) -> (i32, i32, i32) {
    %c0_i32 = arith.constant 0 : i32
    %c0_i32_0 = arith.constant 0 : i32
    %c0_i32_1 = arith.constant 0 : i32
    return %arg0, %c0_i32, %c0_i32_0 : i32, i32, i32
  }
  func.func @transform_1(%arg0: i32) -> (i32, i32) {
    %c0_i32 = arith.constant 0 : i32
    %c0_i32_0 = arith.constant 0 : i32
    %c0_i32_1 = arith.constant 0 : i32
    return %c0_i32, %c0_i32_0 : i32, i32
  }
  func.func @transform_2(%arg0: i32) -> (i32, i32) {
    %c0_i32 = arith.constant 0 : i32
    %c0_i32_0 = arith.constant 0 : i32
    %c0_i32_1 = arith.constant 0 : i32
    return %c0_i32, %c0_i32_0 : i32, i32
  }
  func.func @transform_3(%arg0: i32) -> (i32, i32, i32) {
    %c0_i32 = arith.constant 0 : i32
    %c0_i32_0 = arith.constant 0 : i32
    %c0_i32_1 = arith.constant 0 : i32
    return %arg0, %c0_i32, %c0_i32_0 : i32, i32, i32
  }
}

</mosaic_0001>

<llo_original>
// kernel: tpu_custom_call.1
$region0: #{tpu_custom_call.1}
  #allocation0 [shape = 'u32[]', space=smem, size = 0x4, offset = 0x4, fixed_abs, tag = 'smem constant byte address 0x4 - core index']
  #allocation1 [shape = 'u32[144,128]{1,0:T(1,128)}', space=vmem, size = 0x12000, scoped, tag = 'internal scratch']
  %s0 = inlined_call_operand.hbm [shape: f32[2,16,64], index: 0, kind: input, shape index: {}]
  %s1 = inlined_call_operand.hbm [shape: f32[216,128], index: 1, kind: input, shape index: {}]
  %s2 = inlined_call_operand.vmem [shape: f32[2,128], index: 2, kind: input, shape index: {}]
  %s3 = inlined_call_operand.hbm [shape: f32[2,16,128], index: 3, kind: output, shape index: {}]
  %s4 = sld [smem:[#allocation0]]
  $region53: #{tpu_custom_call.1} parent=0
    _
  %s6 = ssub.s32 1, %s4
  %s7 = scalar_select 0, %s6, %s4
  $region1: #{tpu_custom_call.1} parent=0
    #allocation2 [shape = 'u8[16384]{0}', space=vmem, size = 0x4000, scoped, tag = 'input window, operand 0']
    #allocation3 [shape = 's32[2]{0}', space=sflag, size = 0x8, scoped, tag = 'scoped memory for tpu_custom_call.1']
    #allocation4 [shape = 's32[2]{0}', space=sflag, size = 0x8, scoped, tag = 'scoped memory for tpu_custom_call.1']
    #allocation5 [shape = 'u8[110592]{0}', space=vmem, size = 0x1b000, scoped, tag = 'input window, operand 1, single buffered']
    #allocation6 [shape = 's32[1]{0}', space=sflag, size = 0x4, scoped, tag = 'scoped memory for tpu_custom_call.1']
    #allocation7 [shape = 'u8[16384]{0}', space=vmem, size = 0x4000, scoped, tag = 'output window, operand 0']
    %8 = vsyncpa [#allocation3], 0
    %s9 = scalar_lea.sflag [#allocation3], 1
    %10 = vsyncpa %s9, 0
    %11 = vsyncpa [#allocation6], 0
    %12 = vsyncpa [#allocation4], 0
    %s13 = scalar_lea.sflag [#allocation4], 1
    %14 = vsyncpa %s13, 0
    loop: start=0, step=1, limit=4
    $region2: #{tpu_custom_call.1} parent=1 // loop_pre_header
      _
    $region3: #{tpu_custom_call.1} parent=1 // loop_header
      %s16 = sphi 0, %s20
      %p17 = scmp.ge.s32.totalorder %s16, 4
      %s26 = sphi 0, %s28
      %s29 = sphi 0, %s26
      %s30 = sphi 0, %s29
      %s46 = sphi 0, %s30
      %s50 = sphi 0, %s50
      %s52 = sphi 0, %s50
      %s53 = sphi 0, %s52
      %s67 = sphi 0, %s53
      %s71 = sphi 0, %s71
      %s73 = sphi 0, %s71
      %s74 = sphi 0, %s73
      %s88 = sphi 0, %s74
      %s94 = sphi 0, %s96
      %s97 = sphi 0, %s94
      %s98 = sphi 0, %s97
      %s114 = sphi 0, %s98
    $region4: #{tpu_custom_call.1} parent=1 // loop_header_branch
      %19 = sbr.rel (%p17) target = $region8
    $region5: #{tpu_custom_call.1} parent=1 // loop_body
      %s21 = ssub.s32 %s16, 1
      %s22 = ssub.s32 %s16, 2
      %s23 = sadd.s32 %s16, 1
      %s24 = ssub.s32 %s16, %s23
      %p25 = scmp.eq.s32.totalorder %s24, 0
      %s27 = sadd.s32 %s26, 1
      %s28 = scalar_select %p25, %s26, %s27
      %p31 = pneg %p25
      %p32 = scmp.eq.s32.totalorder %s16, 1
      %p33 = por %p31, %p32
      %p34 = scmp.ne.s32.totalorder %s26, %s29
      %p35 = scmp.eq.s32.totalorder %s16, 0
      %p36 = por %p34, %p35
      %p37 = scmp.ne.s32.totalorder %s26, %s29
      %p38 = scmp.eq.s32.totalorder %s21, 1
      %p39 = por %p37, %p38
      %p40 = scmp.ne.s32.totalorder %s29, %s30
      %p41 = scmp.eq.s32.totalorder %s21, 0
      %p42 = por %p40, %p41
      %p43 = scmp.ne.s32.totalorder %s29, %s30
      %p44 = scmp.eq.s32.totalorder %s22, 1
      %p45 = por %p43, %p44
      %p47 = scmp.ne.s32.totalorder %s30, %s46
      %p48 = scmp.eq.s32.totalorder %s22, 0
      %p49 = por %p47, %p48
      %s51 = sadd.s32 %s50, 1
      %p54 = scmp.eq.s32.totalorder %s16, 1
      %p55 = scmp.ne.s32.totalorder %s50, %s52
      %p56 = scmp.eq.s32.totalorder %s16, 0
      %p57 = por %p55, %p56
      %p58 = scmp.ne.s32.totalorder %s50, %s52
      %p59 = scmp.eq.s32.totalorder %s21, 1
      %p60 = por %p58, %p59
      %p61 = scmp.ne.s32.totalorder %s52, %s53
      %p62 = scmp.eq.s32.totalorder %s21, 0
      %p63 = por %p61, %p62
      %p64 = scmp.ne.s32.totalorder %s52, %s53
      %p65 = scmp.eq.s32.totalorder %s22, 1
      %p66 = por %p64, %p65
      %p68 = scmp.ne.s32.totalorder %s53, %s67
      %p69 = scmp.eq.s32.totalorder %s22, 0
      %p70 = por %p68, %p69
      %s72 = sadd.s32 %s71, 1
      %p75 = scmp.eq.s32.totalorder %s16, 1
      %p76 = scmp.ne.s32.totalorder %s71, %s73
      %p77 = scmp.eq.s32.totalorder %s16, 0
      %p78 = por %p76, %p77
      %p79 = scmp.ne.s32.totalorder %s71, %s73
      %p80 = scmp.eq.s32.totalorder %s21, 1
      %p81 = por %p79, %p80
      %p82 = scmp.ne.s32.totalorder %s73, %s74
      %p83 = scmp.eq.s32.totalorder %s21, 0
      %p84 = por %p82, %p83
      %p85 = scmp.ne.s32.totalorder %s73, %s74
      %p86 = scmp.eq.s32.totalorder %s22, 1
      %p87 = por %p85, %p86
      %p89 = scmp.ne.s32.totalorder %s74, %s88
      %p90 = scmp.eq.s32.totalorder %s22, 0
      %p91 = por %p89, %p90
      %s92 = ssub.s32 %s16, %s23
      %p93 = scmp.eq.s32.totalorder %s92, 0
      %s95 = sadd.s32 %s94, 1
      %s96 = scalar_select %p93, %s94, %s95
      %p99 = pneg %p93
      %p100 = scmp.eq.s32.totalorder %s16, 1
      %p101 = por %p99, %p100
      %p102 = scmp.ne.s32.totalorder %s94, %s97
      %p103 = scmp.eq.s32.totalorder %s16, 0
      %p104 = por %p102, %p103
      %p105 = scmp.ne.s32.totalorder %s94, %s97
      %p106 = scmp.eq.s32.totalorder %s21, 1
      %p107 = por %p105, %p106
      %p108 = scmp.ne.s32.totalorder %s97, %s98
      %p109 = scmp.eq.s32.totalorder %s21, 0
      %p110 = por %p108, %p109
      %p111 = scmp.ne.s32.totalorder %s97, %s98
      %p112 = scmp.eq.s32.totalorder %s22, 1
      %p113 = por %p111, %p112
      %p115 = scmp.ne.s32.totalorder %s98, %s114
      %p116 = scmp.eq.s32.totalorder %s22, 0
      %p117 = por %p115, %p116
      %p118 = scmp.le.s32.totalorder 1, %s16
      %p119 = scmp.lt.s32.totalorder %s16, 3
      %p120 = pnand %p118, %p119
      %p121 = pneg %p120
      // Predicated region
      $region9: #{tpu_custom_call.1} parent=5 // pred_check
        _
      $region10: #{tpu_custom_call.1} parent=5 // pred_check_branch
        %123 = sbr.rel (%p120) target = $region12
      $region11: #{tpu_custom_call.1} parent=5 // pred_region
        %s124 = ssub.s32 %s16, 1
        // Predicated region
        $region13: #{tpu_custom_call.1} parent=11 // pred_check
          %p125 = pneg %p63
        $region14: #{tpu_custom_call.1} parent=11 // pred_check_branch
          %127 = sbr.rel (%p125) target = $region16
        $region15: #{tpu_custom_call.1} parent=11 // pred_region
          %s129 = ssub.s32 3456, 3456
          %130 = vsyncadd [#allocation6], %s129
          %s131 = sshll.u32 [#allocation5], 4
          %s132 = int_to_ptr.vmem [resolvable:$true] %s131
          %137 = dma.hbm_to_vmem [thread:$0]  %s1, 3456, %s132, [#allocation6], 128, 128, 8
        $region16: #{tpu_custom_call.1} parent=11 // pred_fallthru
          _
        // Predicated region
        $region17: #{tpu_custom_call.1} parent=11 // pred_check
          %p138 = pneg %p84
        $region18: #{tpu_custom_call.1} parent=11 // pred_check_branch
          %140 = sbr.rel (%p138) target = $region20
        $region19: #{tpu_custom_call.1} parent=11 // pred_region
          _
        $region20: #{tpu_custom_call.1} parent=11 // pred_fallthru
          _
      $region12: #{tpu_custom_call.1} parent=5 // pred_fallthru
        _
      %p141 = scmp.lt.s32.totalorder %s16, 2
      // Predicated region
      $region21: #{tpu_custom_call.1} parent=5 // pred_check
        %p142 = pneg %p141
      $region22: #{tpu_custom_call.1} parent=5 // pred_check_branch
        %144 = sbr.rel (%p142) target = $region24
      $region23: #{tpu_custom_call.1} parent=5 // pred_region
        // Predicated region
        $region25: #{tpu_custom_call.1} parent=23 // pred_check
          %p145 = pneg %p36
        $region26: #{tpu_custom_call.1} parent=23 // pred_check_branch
          %147 = sbr.rel (%p145) target = $region28
        $region27: #{tpu_custom_call.1} parent=23 // pred_region
          %s148 = sand.u32 %s26, 1
          %s149 = scalar_lea.sflag [#allocation3], %s148
          %s150 = sand.u32 %s26, 1
          %s151 = smul.addr %s150, 16
          %s152 = scalar_lea.vmem [#allocation2], %s151
          %s154 = ssub.s32 256, 256
          %155 = vsyncadd %s149, %s154
          %s156 = smul.addr %s16, 2
          %s157 = smul.addr %s156, 128
          %s158 = scalar_lea.hbm %s0, %s157
          %s159 = sshll.u32 %s152, 4
          %s160 = int_to_ptr.vmem [resolvable:$true] %s159
          %165 = dma.hbm_to_vmem [thread:$0]  %s158, 256, %s160, %s149, 128, 128, 8
        $region28: #{tpu_custom_call.1} parent=23 // pred_fallthru
          _
      $region24: #{tpu_custom_call.1} parent=5 // pred_fallthru
        _
      %p166 = scmp.le.s32.totalorder 1, %s16
      %p167 = scmp.lt.s32.totalorder %s16, 3
      %p168 = pnand %p166, %p167
      %p169 = pneg %p168
      // Predicated region
      $region29: #{tpu_custom_call.1} parent=5 // pred_check
        _
      $region30: #{tpu_custom_call.1} parent=5 // pred_check_branch
        %171 = sbr.rel (%p168) target = $region32
      $region31: #{tpu_custom_call.1} parent=5 // pred_region
        %s172 = ssub.s32 %s16, 1
        %s173 = sand.u32 %s29, 1
        %s174 = scalar_lea.sflag [#allocation3], %s173
        %s175 = sand.u32 %s29, 1
        %s176 = smul.addr %s175, 16
        %s177 = scalar_lea.vmem [#allocation2], %s176
        // Predicated region
        $region33: #{tpu_custom_call.1} parent=31 // pred_check
          %p178 = pneg %p42
        $region34: #{tpu_custom_call.1} parent=31 // pred_check_branch
          %180 = sbr.rel (%p178) target = $region36
        $region35: #{tpu_custom_call.1} parent=31 // pred_region
          %181 = dma.done %s174, 256
        $region36: #{tpu_custom_call.1} parent=31 // pred_fallthru
          _
        // Predicated region
        $region37: #{tpu_custom_call.1} parent=31 // pred_check
          %p182 = pneg %p63
        $region38: #{tpu_custom_call.1} parent=31 // pred_check_branch
          %184 = sbr.rel (%p182) target = $region40
        $region39: #{tpu_custom_call.1} parent=31 // pred_region
          %185 = dma.done [#allocation6], 3456
        $region40: #{tpu_custom_call.1} parent=31 // pred_fallthru
          _
        %s186 = sand.u32 %s29, 1
        %s187 = scalar_lea.sflag [#allocation3], %s186
        %s188 = sand.u32 %s29, 1
        %s189 = smul.addr %s188, 16
        %s190 = scalar_lea.vmem [#allocation2], %s189
        %p191 = pneg %p42
        %p192 = pneg %p39
        %p193 = pneg %p63
        %p194 = pneg %p60
        %p195 = pneg %p84
        %p196 = pneg %p81
        %p197 = pneg %p110
        %p198 = pneg %p107
        %s199 = sand.u32 %s97, 1
        %s200 = scalar_lea.sflag [#allocation4], %s199
        %s201 = sand.u32 %s97, 1
        %s202 = smul.addr %s201, 16
        %s203 = scalar_lea.vmem [#allocation7], %s202
        %v204 = vld [vmem:[%s177] sm:$0xff]
        %v205 = vld [vmem:[%s177 + $0x8] sm:$0xff]
        %208 = vrot.lane.b32.xlu0 %v204, 124
        %v209 = vpop.permute.xlu0 %208
        %210 = vrot.lane.b32.xlu0 %v205, 124
        %v211 = vpop.permute.xlu0 %210
        %214 = vrot.lane.b32.xlu0 %v204, 4
        %v215 = vpop.permute.xlu0 %214
        %216 = vrot.lane.b32.xlu0 %v205, 4
        %v217 = vpop.permute.xlu0 %216
        %220 = vrot.lane.b32.xlu0 %v204, 12
        %v221 = vpop.permute.xlu0 %220
        %222 = vrot.lane.b32.xlu0 %v205, 12
        %v223 = vpop.permute.xlu0 %222
        %vm226 = vcmask 31744
        %v227 = vsel %vm226, %v209, %v215
        %v228 = vsel %vm226, %v211, %v217
        %vm229 = vcmask 556032
        %v230 = vsel %vm229, %v227, %v221
        %v231 = vsel %vm229, %v228, %v223
        %v233 = vrot.slane %v230, 1
        %vm236 = vcmask 1040384
        %v237 = vrot.slane %v230, 7
        %v238 = vrot.slane %v231, 7
        %v239 = vsel %vm236, %v237, %v238
        %v243 = vrot.slane %v231, 5
        %v245 = vsel %vm236, %v233, %v237
        %v246 = vsel %vm236, %v238, %v243
        %vm249 = vcmask 1046528
        %v250 = vrot.slane %v245, 1
        %v251 = vrot.slane %v239, 1
        %v252 = vsel %vm249, %v250, %v251
        %v253 = vrot.slane %v246, 1
        %v254 = vsel %vm249, %v251, %v253
        %255 = vrot.lane.b32.xlu0 %v252, 72
        %v256 = vpop.permute.xlu0 %255
        %257 = vrot.lane.b32.xlu0 %v254, 72
        %v258 = vpop.permute.xlu0 %257
        %vm261 = vcmask 1045504
        %v262 = vrot.slane %v245, 2
        %v263 = vrot.slane %v239, 2
        %v264 = vsel %vm261, %v262, %v263
        %v265 = vrot.slane %v246, 2
        %v266 = vsel %vm261, %v263, %v265
        %267 = vrot.lane.b32.xlu0 %v264, 16
        %v268 = vpop.permute.xlu0 %267
        %269 = vrot.lane.b32.xlu0 %v266, 16
        %v270 = vpop.permute.xlu0 %269
        %vm273 = vcmask 588800
        %v274 = vsel %vm273, %v245, %v256
        %v275 = vsel %vm273, %v239, %v258
        %vm276 = vcmask 130048
        %v277 = vsel %vm276, %v256, %v268
        %v278 = vsel %vm276, %v258, %v270
        %v279 = vld [vmem:[#allocation5] sm:$0xff]
        %v280 = vld [vmem:[#allocation5 + $0x8] sm:$0xff]
        %v281 = vld [vmem:[#allocation5 + $0x10] sm:$0xff]
        %v282 = vld [vmem:[#allocation5 + $0x18] sm:$0xff]
        %v283 = vld [vmem:[#allocation5 + $0x20] sm:$0xff]
        %v284 = vld [vmem:[#allocation5 + $0x28] sm:$0xff]
        %v285 = vld [vmem:[#allocation5 + $0x30] sm:$0xff]
        %v286 = vld [vmem:[#allocation5 + $0x38] sm:$0xff]
        %v287 = vld [vmem:[#allocation5 + $0x40] sm:$0xff]
        %v288 = vld [vmem:[#allocation5 + $0x48] sm:$0xff]
        %v289 = vld [vmem:[#allocation5 + $0x50] sm:$0xff]
        %v290 = vld [vmem:[#allocation5 + $0x58] sm:$0xff]
        %v291 = vld [vmem:[#allocation5 + $0x60] sm:$0xff]
        %v292 = vld [vmem:[#allocation5 + $0x68] sm:$0xff]
        %v293 = vld [vmem:[#allocation5 + $0x70] sm:$0xff]
        %v294 = vld [vmem:[#allocation5 + $0x78] sm:$0xff]
        %v295 = vld [vmem:[#allocation5 + $0x80] sm:$0xff]
        %v296 = vld [vmem:[#allocation5 + $0x88] sm:$0xff]
        %v297 = vld [vmem:[#allocation5 + $0x90] sm:$0xff]
        %v298 = vld [vmem:[#allocation5 + $0x98] sm:$0xff]
        %v299 = vld [vmem:[#allocation5 + $0xa0] sm:$0xff]
        %v300 = vld [vmem:[#allocation5 + $0xa8] sm:$0xff]
        %v301 = vld [vmem:[#allocation5 + $0xb0] sm:$0xff]
        %v302 = vld [vmem:[#allocation5 + $0xb8] sm:$0xff]
        %v303 = vld [vmem:[#allocation5 + $0xc0] sm:$0xff]
        %v304 = vld [vmem:[#allocation5 + $0xc8] sm:$0xff]
        %v305 = vld [vmem:[#allocation5 + $0xd0] sm:$0xff]
        %v306 = vld [vmem:[%s2] sm:$0x1]
        %v307 = vlaneseq
        %v308 = vshrl.u32 %v307, 7
        %v309 = vsub.s32 0, %v308
        %v310 = vrot.slane %v306, %v309
        %vm311 = vcmask 719872
        %v313 = vsel %vm311, %v277, 0
        %v316 = vsel %vm311, %v278, 0
        %318 = vmatprep.subr.mxu0 0.0
        %319 = vmatpush1.msra.mxu0 %v279
        %320 = vmatprep.subr.mxu0 0.0
        %321 = vmatpush1.msra.mxu0 %v280
        %322 = vmatprep.subr.mxu0 0.0
        %323 = vmatpush1.msra.mxu0 %v281
        %324 = vmatprep.subr.mxu0 0.0
        %325 = vmatpush1.msra.mxu0 %v282
        %326 = vmatprep.subr.mxu0 0.0
        %327 = vmatpush1.msra.mxu0 %v283
        %328 = vmatprep.subr.mxu0 0.0
        %329 = vmatpush1.msra.mxu0 %v284
        %330 = vmatprep.subr.mxu0 0.0
        %331 = vmatpush1.msra.mxu0 %v285
        %332 = vmatprep.subr.mxu0 0.0
        %333 = vmatpush1.msra.mxu0 %v286
        %334 = vmatprep.subr.mxu0 0.0
        %335 = vmatpush1.msra.mxu0 %v287
        %336 = vmatprep.subr.mxu0 0.0
        %337 = vmatpush1.msra.mxu0 %v288
        %338 = vmatprep.subr.mxu0 0.0
        %339 = vmatpush1.msra.mxu0 %v289
        %340 = vmatprep.subr.mxu0 0.0
        %341 = vmatpush1.msra.mxu0 %v290
        %342 = vmatprep.subr.mxu0 0.0
        %343 = vmatpush1.msra.mxu0 %v291
        %344 = vmatprep.subr.mxu0 0.0
        %345 = vmatpush1.msra.mxu0 %v292
        %346 = vmatprep.subr.mxu0 0.0
        %347 = vmatpush1.msra.mxu0 %v293
        %348 = vmatprep.subr.mxu0 0.0
        %349 = vmatpush1.msra.mxu0 %v294
        %350 = vmatprep.subr.mxu0 0.0
        %351 = vmatpush1.msra.mxu0 %v295
        %352 = vmatprep.subr.mxu0 0.0
        %353 = vmatpush1.msra.mxu0 %v296
        %354 = vmatprep.subr.mxu0 0.0
        %355 = vmatpush1.msra.mxu0 %v297
        %356 = vmatprep.subr.mxu0 0.0
        %357 = vmatpush1.msra.mxu0 %v298
        %358 = vmatprep.subr.mxu0 0.0
        %359 = vmatpush1.msra.mxu0 %v299
        %360 = vmatprep.subr.mxu0 0.0
        %361 = vmatpush1.msra.mxu0 %v300
        %362 = vmatprep.subr.mxu0 0.0
        %363 = vmatpush1.msra.mxu0 %v301
        %364 = vmatprep.subr.mxu0 0.0
        %365 = vmatpush1.msra.mxu0 %v302
        %366 = vmatprep.subr.mxu0 0.0
        %367 = vmatpush1.msra.mxu0 %v303
        %368 = vmatprep.subr.mxu0 0.0
        %369 = vmatpush1.msra.mxu0 %v304
        %370 = vmatprep.subr.mxu0 0.0
        %371 = vmatpush1.msra.mxu0 %v305
        %372 = vmatprep.subr.mxu0 0.0
        %373 = vmatpush1.msra.mxu0 0.0
        %374 = vmatprep.subr.mxu0 0.0
        %375 = vmatpush1.msra.mxu0 0.0
        %376 = vmatprep.subr.mxu0 0.0
        %377 = vmatpush1.msra.mxu0 0.0
        %378 = vmatprep.subr.mxu0 0.0
        %379 = vmatpush1.msra.mxu0 0.0
        %380 = vmatprep.subr.mxu0 0.0
        %381 = vmatpush1.msra.mxu0 0.0
        %382 = vmatprep.mubr.f32.mxu0 %v313
        %383 = vmatmul.mubr.f32.gmra.mrb[0].mxu0 %v274
        %v384 = vpop.f32.mrb[0].mxu0
        %v385 = vadd.f32 %v310, %v384
        %v386 = vpop.f32.mrb[0].mxu0
        %387 = vmatprep.mubr.f32.mxu0 %v316
        %388 = vmatmul.mubr.f32.gmra.mrb[0].mxu0 %v275
        %v389 = vpop.f32.mrb[0].mxu0
        %v390 = vadd.f32 %v310, %v389
        %v391 = vpop.f32.mrb[0].mxu0
        %392 = vdwg.mxu0
        %v393 = vld [vmem:[%s2 + $0x1] sm:$0x1]
        %vm394 = vcmp.gt.f32.partialorder %v385, 0.0
        %vm395 = vcmp.gt.f32.partialorder %v390, 0.0
        %v396 = vlaneseq
        %v397 = vshrl.u32 %v396, 7
        %v398 = vsub.s32 0, %v397
        %v399 = vrot.slane %v393, %v398
        %v400 = vmul.f32 %v399, %v385
        %v401 = vmul.f32 %v399, %v390
        %v402 = vsel %vm394, %v385, %v400
        %v403 = vsel %vm395, %v390, %v401
        %404 = vst [vmem:[%s203] sm:$0xff] %v402
        %405 = vst [vmem:[%s203 + $0x8] sm:$0xff] %v403
        %s406 = sand.u32 %s97, 1
        %s407 = scalar_lea.sflag [#allocation4], %s406
        %s408 = sand.u32 %s97, 1
        %s409 = smul.addr %s408, 16
        %s410 = scalar_lea.vmem [#allocation7], %s409
        // Predicated region
        $region41: #{tpu_custom_call.1} parent=31 // pred_check
          %p411 = pneg %p107
        $region42: #{tpu_custom_call.1} parent=31 // pred_check_branch
          %413 = sbr.rel (%p411) target = $region44
        $region43: #{tpu_custom_call.1} parent=31 // pred_region
          %s415 = ssub.s32 256, 256
          %416 = vsyncadd %s407, %s415
          %s417 = smul.addr %s21, 2
          %s418 = smul.addr %s417, 128
          %s419 = scalar_lea.hbm %s3, %s418
          %s420 = sshll.u32 %s410, 4
          %s421 = int_to_ptr.vmem [resolvable:$true] %s420
          %426 = dma.vmem_to_hbm [thread:$0]  %s421, 256, %s419, %s407, 128, 128, 8
        $region44: #{tpu_custom_call.1} parent=31 // pred_fallthru
          _
      $region32: #{tpu_custom_call.1} parent=5 // pred_fallthru
        _
      %p427 = scmp.le.s32.totalorder 2, %s16
      // Predicated region
      $region45: #{tpu_custom_call.1} parent=5 // pred_check
        %p428 = pneg %p427
      $region46: #{tpu_custom_call.1} parent=5 // pred_check_branch
        %430 = sbr.rel (%p428) target = $region48
      $region47: #{tpu_custom_call.1} parent=5 // pred_region
        %s431 = ssub.s32 %s16, 2
        // Predicated region
        $region49: #{tpu_custom_call.1} parent=47 // pred_check
          %p432 = pneg %p113
        $region50: #{tpu_custom_call.1} parent=47 // pred_check_branch
          %434 = sbr.rel (%p432) target = $region52
        $region51: #{tpu_custom_call.1} parent=47 // pred_region
          %s435 = sand.u32 %s98, 1
          %s436 = scalar_lea.sflag [#allocation4], %s435
          %s437 = sand.u32 %s98, 1
          %s438 = smul.addr %s437, 16
          %s439 = scalar_lea.vmem [#allocation7], %s438
          %440 = dma.done %s436, 256
        $region52: #{tpu_custom_call.1} parent=47 // pred_fallthru
          _
      $region48: #{tpu_custom_call.1} parent=5 // pred_fallthru
        _
    $region6: #{tpu_custom_call.1} parent=1 // loop_footer
      %s20 = sadd.s32 1, %s16
    $region7: #{tpu_custom_call.1} parent=1 // loop_footer_branch
      %15 = sbr.rel target = $region3
    $region8: #{tpu_custom_call.1} parent=1 // loop_exit
      _
    %441 = vsyncpa [#allocation3], 1
    %s442 = scalar_lea.sflag [#allocation3], 1
    %443 = vsyncpa %s442, 1
    %444 = vsyncpa [#allocation6], 1
    %445 = vsyncpa [#allocation4], 1
    %s446 = scalar_lea.sflag [#allocation4], 1
    %447 = vsyncpa %s446, 1

</llo_original>
